<compile_context>
chip_gen: v5e
topology: v5e:2x2
jax: 0.10.0
libtpu: 0.0.40
codegen_flags: <defaults>
</compile_context>

<pallas_src>
import jax
import jax.numpy as jnp
from jax.experimental import pallas as pl
from jax.experimental.pallas import tpu as pltpu  # noqa: F401  (TPU backend assumed)

BATCH = 2
CUR_PATCHES = 16          # x already arrives with exactly `current_patches` patches
HIDDEN = 32
MLP_DIM = 64
BN_EPS = 1e-5
NEG_SLOPE = 0.3


def _leaky(v):
    # LeakyReLU(0.3)
    return jnp.where(v > 0, v, NEG_SLOPE * v)


def _mixer_kernel(x_ref, pk_ref, out_ref):
    # x_ref:  (N, H)           flattened (batch * patches, hidden), f32
    # pk_ref: (H + F + 6, W)   packed params: rows [0:H)=w1(H,F), [H:H+F)=w2(F,H),
    #                          then 6 rows = b_fc1, b_fc2, g1, be1, g2, be2
    # out_ref: (N//g, H*g)     lane-dense output slab (g>1) or (N, H) fallback
    N, H = x_ref.shape
    F = pk_ref.shape[0] - H - 6

    x = x_ref[...]                               # (N, H)
    w1 = pk_ref[0:H, :F]                         # (H, F)  fc1 weight (pre-transposed)
    w2 = pk_ref[H:H + F, :H]                     # (F, H)  fc2 weight (pre-transposed)
    vecs = pk_ref[H + F:H + F + 6, :]            # (6, W)  packed small vectors

    # Hoisted full-width fc-bias broadcasts: mlp() is applied twice with the same
    # shared weights and JAX does not CSE broadcast_in_dim.
    b_fc1 = jnp.broadcast_to(vecs[0:1, :F], (N, F))
    b_fc2 = jnp.broadcast_to(vecs[1:2, :H], (N, H))
    g1, be1 = vecs[2:3, :H], vecs[3:4, :H]
    g2, be2 = vecs[4:5, :H], vecs[5:6, :H]

    ones_row = jnp.ones((1, N), jnp.float32)
    inv_n = jnp.float32(1.0 / N)

    def batchnorm(v, g, b):
        # Training-mode BatchNorm1d: per-channel stats over all rows (batch*patches),
        # biased variance, eps=1e-5.  Column sums computed on the (otherwise idle)
        # MXU in one pass instead of two serial XLU axis-0 reductions.
        s1 = jnp.dot(ones_row, v, preferred_element_type=jnp.float32)       # (1, H)
        s2 = jnp.dot(ones_row, v * v, preferred_element_type=jnp.float32)   # (1, H)
        mu = s1 * inv_n
        var = jnp.maximum(s2 * inv_n - mu * mu, 0.0)
        return (v - mu) * (jax.lax.rsqrt(var + BN_EPS) * g) + b

    def mlp(v):
        h = _leaky(jnp.dot(v, w1, preferred_element_type=jnp.float32) + b_fc1)
        return _leaky(jnp.dot(h, w2, preferred_element_type=jnp.float32) + b_fc2)

    y = x + mlp(batchnorm(x, g1, be1))
    y = y + mlp(batchnorm(y, g2, be2))
    y = y.astype(out_ref.dtype)

    # Lane-dense epilogue: pack g row-chunks of y side by side along lanes so the
    # output tile (and its HBM writeback DMA) is 128-wide instead of H(=32)-wide.
    g_out = out_ref.shape[1] // H
    if g_out == 1:
        out_ref[...] = y
    else:
        rows = out_ref.shape[0]
        for c in range(g_out):
            out_ref[:, c * H:(c + 1) * H] = y[c * rows:(c + 1) * rows, :]


def _lane_groups(n_rows, hidden):
    """Group factor g so the kernel output is (n_rows//g, hidden*g) with a 128-wide
    (lane-dense) last dim; 1 if the static shape doesn't allow it."""
    if hidden < 128 and 128 % hidden == 0:
        g = 128 // hidden
        if n_rows % g == 0 and (n_rows // g) % 8 == 0:
            return g
    return 1


def mixer_block(x, packed_params):
    """x: (B, P, H) f32 -> (B, P, H); matches DynamicMLPMixerBlock.forward.

    `current_patches` is simply x.shape[1] (the PyTorch module already receives a
    tensor with exactly current_patches patches, so no masking is needed)."""
    # TODO(synk): if the patch count must vary at runtime under one compilation,
    # pass the true row count via scalar prefetch and mask the BN reductions.
    B, P, H = x.shape
    N = B * P
    x2d = x.reshape(N, H)                       # lane-friendly slab; reshape free outside

    g = _lane_groups(N, H)
    out = pl.pallas_call(
        _mixer_kernel,
        out_shape=jax.ShapeDtypeStruct((N // g, H * g), jnp.float32),
    )(x2d, packed_params)

    if g > 1:
        out = out.reshape(N // g, g, H).swapaxes(0, 1).reshape(N, H)
    return out.reshape(B, P, H)


def init_params(key, hidden=HIDDEN, mlp_dim=MLP_DIM):
    ks = jax.random.split(key, 8)
    s = 0.05
    # nn.Linear stores weight as (out, in); keep the pre-transposed (in, out) form
    # so the kernel computes x @ W directly.
    return dict(
        w1=jax.random.normal(ks[0], (hidden, mlp_dim), jnp.float32) * s,
        w2=jax.random.normal(ks[1], (mlp_dim, hidden), jnp.float32) * s,
        b_fc1=jax.random.normal(ks[2], (mlp_dim,), jnp.float32) * s,
        b_fc2=jax.random.normal(ks[3], (hidden,), jnp.float32) * s,
        g1=1.0 + 0.1 * jax.random.normal(ks[4], (hidden,), jnp.float32),
        be1=0.1 * jax.random.normal(ks[5], (hidden,), jnp.float32),
        g2=1.0 + 0.1 * jax.random.normal(ks[6], (hidden,), jnp.float32),
        be2=0.1 * jax.random.normal(ks[7], (hidden,), jnp.float32),
    )


def pack_params(p):
    """Pack ALL parameters into one (H+F+6, max(H,F)) array.

    Done once at init time, outside the per-call jitted path, so each forward pass
    issues exactly 2 input DMAs (x + params)."""
    H, F = p["w1"].shape
    W = max(H, F)
    pk = jnp.zeros((H + F + 6, W), jnp.float32)
    pk = pk.at[0:H, :F].set(p["w1"])
    pk = pk.at[H:H + F, :H].set(p["w2"])
    r = H + F
    pk = pk.at[r + 0, :F].set(p["b_fc1"])
    pk = pk.at[r + 1, :H].set(p["b_fc2"])
    pk = pk.at[r + 2, :H].set(p["g1"])
    pk = pk.at[r + 3, :H].set(p["be1"])
    pk = pk.at[r + 4, :H].set(p["g2"])
    pk = pk.at[r + 5, :H].set(p["be2"])
    return pk


def reference(x, p):
    """Pure-JAX mirror of DynamicMLPMixerBlock.forward (training-mode BatchNorm)."""
    def bn(v, g, b):
        mu = v.mean(axis=(0, 1), keepdims=True)
        var = ((v - mu) ** 2).mean(axis=(0, 1), keepdims=True)
        return (v - mu) * jax.lax.rsqrt(var + BN_EPS) * g + b

    def mlp(v):
        h = _leaky(v @ p["w1"] + p["b_fc1"])
        return _leaky(h @ p["w2"] + p["b_fc2"])

    y = x + mlp(bn(x, p["g1"], p["be1"]))
    y = y + mlp(bn(y, p["g2"], p["be2"]))
    return y


if __name__ == "__main__":
    key = jax.random.PRNGKey(0)
    kp, kx = jax.random.split(key)
    params = init_params(kp)
    packed = pack_params(params)          # packed ONCE, outside the per-call path
    x = jax.random.normal(kx, (BATCH, CUR_PATCHES, HIDDEN), jnp.float32)

    run = jax.jit(mixer_block)
    out = jax.block_until_ready(run(x, packed))

    ref = reference(x, params)
    assert out.shape == (BATCH, CUR_PATCHES, HIDDEN)
    assert bool(jnp.all(jnp.isfinite(out)))
    err = float(jnp.max(jnp.abs(out - ref)))
    assert err < 5e-4, f"mismatch vs JAX reference: {err}"
    print("KERNEL_OK")
</pallas_src>

<mosaic_0001>
module attributes {stable_mosaic.version = 11 : i64} {
  func.func @_mixer_kernel(%arg0: memref<32x32xf32, #tpu.memory_space<vmem>>, %arg1: memref<102x64xf32, #tpu.memory_space<vmem>>, %arg2: memref<8x128xf32, #tpu.memory_space<vmem>>) attributes {dimension_semantics = [], scalar_prefetch = 0 : i64, scratch_operands = 0 : i64, tpu.core_type = #tpu.core_type<tc>} {
    %c0 = arith.constant 0 : index
    %c0_0 = arith.constant 0 : index
    %0 = vector.load %arg0[%c0, %c0_0] : memref<32x32xf32, #tpu.memory_space<vmem>>, vector<32x32xf32>
    %c0_1 = arith.constant 0 : index
    %c0_2 = arith.constant 0 : index
    %1 = vector.load %arg1[%c0_1, %c0_2] : memref<102x64xf32, #tpu.memory_space<vmem>>, vector<32x64xf32>
    %c32 = arith.constant 32 : index
    %c0_3 = arith.constant 0 : index
    %2 = vector.load %arg1[%c32, %c0_3] : memref<102x64xf32, #tpu.memory_space<vmem>>, vector<64x32xf32>
    %c96 = arith.constant 96 : index
    %c0_4 = arith.constant 0 : index
    %3 = vector.load %arg1[%c96, %c0_4] : memref<102x64xf32, #tpu.memory_space<vmem>>, vector<6x64xf32>
    %4 = vector.extract_strided_slice %3 {offsets = [0, 0], sizes = [1, 64], strides = [1, 1]} : vector<6x64xf32> to vector<1x64xf32>
    %5 = vector.shape_cast %4 : vector<1x64xf32> to vector<1x64xf32>
    %6 = vector.broadcast %5 : vector<1x64xf32> to vector<32x64xf32>
    %7 = vector.extract_strided_slice %3 {offsets = [1, 0], sizes = [1, 32], strides = [1, 1]} : vector<6x64xf32> to vector<1x32xf32>
    %8 = vector.shape_cast %7 : vector<1x32xf32> to vector<1x32xf32>
    %9 = vector.broadcast %8 : vector<1x32xf32> to vector<32x32xf32>
    %10 = vector.extract_strided_slice %3 {offsets = [2, 0], sizes = [1, 32], strides = [1, 1]} : vector<6x64xf32> to vector<1x32xf32>
    %11 = vector.extract_strided_slice %3 {offsets = [3, 0], sizes = [1, 32], strides = [1, 1]} : vector<6x64xf32> to vector<1x32xf32>
    %12 = vector.extract_strided_slice %3 {offsets = [4, 0], sizes = [1, 32], strides = [1, 1]} : vector<6x64xf32> to vector<1x32xf32>
    %13 = vector.extract_strided_slice %3 {offsets = [5, 0], sizes = [1, 32], strides = [1, 1]} : vector<6x64xf32> to vector<1x32xf32>
    %cst = arith.constant 1.000000e+00 : f32
    %14 = vector.broadcast %cst : f32 to vector<1x32xf32>
    %cst_5 = arith.constant dense<0.000000e+00> : vector<1x32xf32>
    %15 = tpu.matmul %14, %0, %cst_5 {dimension_numbers = #tpu.dot_dimension_numbers<[1], [0], [0], [1], [0, 0, 1, 1], [], []>} : vector<1x32xf32>, vector<32x32xf32>, vector<1x32xf32> -> vector<1x32xf32>
    %16 = arith.mulf %0, %0 : vector<32x32xf32>
    %cst_6 = arith.constant dense<0.000000e+00> : vector<1x32xf32>
    %17 = tpu.matmul %14, %16, %cst_6 {dimension_numbers = #tpu.dot_dimension_numbers<[1], [0], [0], [1], [0, 0, 1, 1], [], []>} : vector<1x32xf32>, vector<32x32xf32>, vector<1x32xf32> -> vector<1x32xf32>
    %cst_7 = arith.constant 3.125000e-02 : f32
    %18 = vector.broadcast %cst_7 : f32 to vector<1x32xf32>
    %19 = arith.mulf %15, %18 : vector<1x32xf32>
    %cst_8 = arith.constant 3.125000e-02 : f32
    %20 = vector.broadcast %cst_8 : f32 to vector<1x32xf32>
    %21 = arith.mulf %17, %20 : vector<1x32xf32>
    %22 = arith.mulf %19, %19 : vector<1x32xf32>
    %23 = arith.subf %21, %22 : vector<1x32xf32>
    %cst_9 = arith.constant 0.000000e+00 : f32
    %24 = vector.broadcast %cst_9 : f32 to vector<1x32xf32>
    %25 = arith.maximumf %23, %24 : vector<1x32xf32>
    %26 = vector.broadcast %19 : vector<1x32xf32> to vector<32x32xf32>
    %27 = arith.subf %0, %26 : vector<32x32xf32>
    %cst_10 = arith.constant 9.99999974E-6 : f32
    %28 = vector.broadcast %cst_10 : f32 to vector<1x32xf32>
    %29 = arith.addf %25, %28 : vector<1x32xf32>
    %30 = math.rsqrt %29 : vector<1x32xf32>
    %31 = arith.mulf %30, %10 : vector<1x32xf32>
    %32 = vector.broadcast %31 : vector<1x32xf32> to vector<32x32xf32>
    %33 = arith.mulf %27, %32 : vector<32x32xf32>
    %34 = vector.broadcast %11 : vector<1x32xf32> to vector<32x32xf32>
    %35 = arith.addf %33, %34 : vector<32x32xf32>
    %cst_11 = arith.constant dense<0.000000e+00> : vector<32x64xf32>
    %36 = tpu.matmul %35, %1, %cst_11 {dimension_numbers = #tpu.dot_dimension_numbers<[1], [0], [0], [1], [0, 0, 1, 1], [], []>} : vector<32x32xf32>, vector<32x64xf32>, vector<32x64xf32> -> vector<32x64xf32>
    %37 = arith.addf %36, %6 : vector<32x64xf32>
    %cst_12 = arith.constant 0.000000e+00 : f32
    %38 = vector.broadcast %cst_12 : f32 to vector<32x64xf32>
    %39 = arith.cmpf ogt, %37, %38 : vector<32x64xf32>
    %cst_13 = arith.constant 3.000000e-01 : f32
    %40 = vector.broadcast %cst_13 : f32 to vector<32x64xf32>
    %41 = arith.mulf %40, %37 : vector<32x64xf32>
    %42 = arith.select %39, %37, %41 : vector<32x64xi1>, vector<32x64xf32>
    %cst_14 = arith.constant dense<0.000000e+00> : vector<32x32xf32>
    %43 = tpu.matmul %42, %2, %cst_14 {dimension_numbers = #tpu.dot_dimension_numbers<[1], [0], [0], [1], [0, 0, 1, 1], [], []>} : vector<32x64xf32>, vector<64x32xf32>, vector<32x32xf32> -> vector<32x32xf32>
    %44 = arith.addf %43, %9 : vector<32x32xf32>
    %cst_15 = arith.constant 0.000000e+00 : f32
    %45 = vector.broadcast %cst_15 : f32 to vector<32x32xf32>
    %46 = arith.cmpf ogt, %44, %45 : vector<32x32xf32>
    %cst_16 = arith.constant 3.000000e-01 : f32
    %47 = vector.broadcast %cst_16 : f32 to vector<32x32xf32>
    %48 = arith.mulf %47, %44 : vector<32x32xf32>
    %49 = arith.select %46, %44, %48 : vector<32x32xi1>, vector<32x32xf32>
    %50 = arith.addf %0, %49 : vector<32x32xf32>
    %cst_17 = arith.constant dense<0.000000e+00> : vector<1x32xf32>
    %51 = tpu.matmul %14, %50, %cst_17 {dimension_numbers = #tpu.dot_dimension_numbers<[1], [0], [0], [1], [0, 0, 1, 1], [], []>} : vector<1x32xf32>, vector<32x32xf32>, vector<1x32xf32> -> vector<1x32xf32>
    %52 = arith.mulf %50, %50 : vector<32x32xf32>
    %cst_18 = arith.constant dense<0.000000e+00> : vector<1x32xf32>
    %53 = tpu.matmul %14, %52, %cst_18 {dimension_numbers = #tpu.dot_dimension_numbers<[1], [0], [0], [1], [0, 0, 1, 1], [], []>} : vector<1x32xf32>, vector<32x32xf32>, vector<1x32xf32> -> vector<1x32xf32>
    %cst_19 = arith.constant 3.125000e-02 : f32
    %54 = vector.broadcast %cst_19 : f32 to vector<1x32xf32>
    %55 = arith.mulf %51, %54 : vector<1x32xf32>
    %cst_20 = arith.constant 3.125000e-02 : f32
    %56 = vector.broadcast %cst_20 : f32 to vector<1x32xf32>
    %57 = arith.mulf %53, %56 : vector<1x32xf32>
    %58 = arith.mulf %55, %55 : vector<1x32xf32>
    %59 = arith.subf %57, %58 : vector<1x32xf32>
    %cst_21 = arith.constant 0.000000e+00 : f32
    %60 = vector.broadcast %cst_21 : f32 to vector<1x32xf32>
    %61 = arith.maximumf %59, %60 : vector<1x32xf32>
    %62 = vector.broadcast %55 : vector<1x32xf32> to vector<32x32xf32>
    %63 = arith.subf %50, %62 : vector<32x32xf32>
    %cst_22 = arith.constant 9.99999974E-6 : f32
    %64 = vector.broadcast %cst_22 : f32 to vector<1x32xf32>
    %65 = arith.addf %61, %64 : vector<1x32xf32>
    %66 = math.rsqrt %65 : vector<1x32xf32>
    %67 = arith.mulf %66, %12 : vector<1x32xf32>
    %68 = vector.broadcast %67 : vector<1x32xf32> to vector<32x32xf32>
    %69 = arith.mulf %63, %68 : vector<32x32xf32>
    %70 = vector.broadcast %13 : vector<1x32xf32> to vector<32x32xf32>
    %71 = arith.addf %69, %70 : vector<32x32xf32>
    %cst_23 = arith.constant dense<0.000000e+00> : vector<32x64xf32>
    %72 = tpu.matmul %71, %1, %cst_23 {dimension_numbers = #tpu.dot_dimension_numbers<[1], [0], [0], [1], [0, 0, 1, 1], [], []>} : vector<32x32xf32>, vector<32x64xf32>, vector<32x64xf32> -> vector<32x64xf32>
    %73 = arith.addf %72, %6 : vector<32x64xf32>
    %cst_24 = arith.constant 0.000000e+00 : f32
    %74 = vector.broadcast %cst_24 : f32 to vector<32x64xf32>
    %75 = arith.cmpf ogt, %73, %74 : vector<32x64xf32>
    %cst_25 = arith.constant 3.000000e-01 : f32
    %76 = vector.broadcast %cst_25 : f32 to vector<32x64xf32>
    %77 = arith.mulf %76, %73 : vector<32x64xf32>
    %78 = arith.select %75, %73, %77 : vector<32x64xi1>, vector<32x64xf32>
    %cst_26 = arith.constant dense<0.000000e+00> : vector<32x32xf32>
    %79 = tpu.matmul %78, %2, %cst_26 {dimension_numbers = #tpu.dot_dimension_numbers<[1], [0], [0], [1], [0, 0, 1, 1], [], []>} : vector<32x64xf32>, vector<64x32xf32>, vector<32x32xf32> -> vector<32x32xf32>
    %80 = arith.addf %79, %9 : vector<32x32xf32>
    %cst_27 = arith.constant 0.000000e+00 : f32
    %81 = vector.broadcast %cst_27 : f32 to vector<32x32xf32>
    %82 = arith.cmpf ogt, %80, %81 : vector<32x32xf32>
    %cst_28 = arith.constant 3.000000e-01 : f32
    %83 = vector.broadcast %cst_28 : f32 to vector<32x32xf32>
    %84 = arith.mulf %83, %80 : vector<32x32xf32>
    %85 = arith.select %82, %80, %84 : vector<32x32xi1>, vector<32x32xf32>
    %86 = arith.addf %50, %85 : vector<32x32xf32>
    %87 = vector.extract_strided_slice %86 {offsets = [0, 0], sizes = [8, 32], strides = [1, 1]} : vector<32x32xf32> to vector<8x32xf32>
    %c0_29 = arith.constant 0 : index
    %c0_30 = arith.constant 0 : index
    %88 = vector.load %arg2[%c0_29, %c0_30] : memref<8x128xf32, #tpu.memory_space<vmem>>, vector<8x32xf32>
    tpu.vector_store %arg2[%c0_29, %c0_30], %87 {strides = array<i32>} : memref<8x128xf32, #tpu.memory_space<vmem>>, vector<8x32xf32>,
    %89 = vector.extract_strided_slice %86 {offsets = [8, 0], sizes = [8, 32], strides = [1, 1]} : vector<32x32xf32> to vector<8x32xf32>
    %c0_31 = arith.constant 0 : index
    %c32_32 = arith.constant 32 : index
    %90 = vector.load %arg2[%c0_31, %c32_32] : memref<8x128xf32, #tpu.memory_space<vmem>>, vector<8x32xf32>
    tpu.vector_store %arg2[%c0_31, %c32_32], %89 {strides = array<i32>} : memref<8x128xf32, #tpu.memory_space<vmem>>, vector<8x32xf32>,
    %91 = vector.extract_strided_slice %86 {offsets = [16, 0], sizes = [8, 32], strides = [1, 1]} : vector<32x32xf32> to vector<8x32xf32>
    %c0_33 = arith.constant 0 : index
    %c64 = arith.constant 64 : index
    %92 = vector.load %arg2[%c0_33, %c64] : memref<8x128xf32, #tpu.memory_space<vmem>>, vector<8x32xf32>
    tpu.vector_store %arg2[%c0_33, %c64], %91 {strides = array<i32>} : memref<8x128xf32, #tpu.memory_space<vmem>>, vector<8x32xf32>,
    %93 = vector.extract_strided_slice %86 {offsets = [24, 0], sizes = [8, 32], strides = [1, 1]} : vector<32x32xf32> to vector<8x32xf32>
    %c0_34 = arith.constant 0 : index
    %c96_35 = arith.constant 96 : index
    %94 = vector.load %arg2[%c0_34, %c96_35] : memref<8x128xf32, #tpu.memory_space<vmem>>, vector<8x32xf32>
    tpu.vector_store %arg2[%c0_34, %c96_35], %93 {strides = array<i32>} : memref<8x128xf32, #tpu.memory_space<vmem>>, vector<8x32xf32>,
    return
  }
}

</mosaic_0001>

<llo_original>
// kernel: mixer_block.1
$region0: #{mixer_block.1}
  #allocation0 [shape = 'u32[]', space=smem, size = 0x4, offset = 0x4, fixed_abs, tag = 'smem constant byte address 0x4 - core index']
  #allocation1 [shape = 'u32[72,128]{1,0:T(1,128)}', space=vmem, size = 0x9000, scoped, tag = 'internal scratch']
  %s0 = inlined_call_operand.vmem [shape: f32[32,32], index: 0, kind: input, shape index: {}]
  %s1 = inlined_call_operand.vmem [shape: f32[102,64], index: 1, kind: input, shape index: {}]
  %s2 = inlined_call_operand.vmem [shape: f32[8,128], index: 2, kind: output, shape index: {}]
  %s3 = sld [smem:[#allocation0]]
  $region18: #{mixer_block.1} parent=0
    _
  %s5 = ssub.s32 1, %s3
  %s6 = scalar_select 0, %s5, %s3
  // Predicated region
  $region2: #{mixer_block.1} parent=0 // pred_check
    _
  $region3: #{mixer_block.1} parent=0 // pred_check_branch
    %8 = sbr.rel (0) target = $region5
  $region4: #{mixer_block.1} parent=0 // pred_region
    _
  $region5: #{mixer_block.1} parent=0 // pred_fallthru
    _
  // Predicated region
  $region6: #{mixer_block.1} parent=0 // pred_check
    _
  $region7: #{mixer_block.1} parent=0 // pred_check_branch
    %10 = sbr.rel (0) target = $region9
  $region8: #{mixer_block.1} parent=0 // pred_region
    _
  $region9: #{mixer_block.1} parent=0 // pred_fallthru
    _
  %v11 = vld [vmem:[%s0] sm:$0xff]
  %v12 = vld [vmem:[%s0 + $0x8] sm:$0xff]
  %v13 = vld [vmem:[%s0 + $0x10] sm:$0xff]
  %v14 = vld [vmem:[%s0 + $0x18] sm:$0xff]
  %v15 = vld [vmem:[%s1] sm:$0xff]
  %v16 = vld [vmem:[%s1 + $0x8] sm:$0xff]
  %v17 = vld [vmem:[%s1 + $0x10] sm:$0xff]
  %v18 = vld [vmem:[%s1 + $0x18] sm:$0xff]
  %v19 = vld [vmem:[%s1 + $0x20] sm:$0xff]
  %v20 = vld [vmem:[%s1 + $0x28] sm:$0xff]
  %v21 = vld [vmem:[%s1 + $0x30] sm:$0xff]
  %v22 = vld [vmem:[%s1 + $0x38] sm:$0xff]
  %v23 = vld [vmem:[%s1 + $0x40] sm:$0xff]
  %v24 = vld [vmem:[%s1 + $0x48] sm:$0xff]
  %v25 = vld [vmem:[%s1 + $0x50] sm:$0xff]
  %v26 = vld [vmem:[%s1 + $0x58] sm:$0xff]
  %v27 = vld [vmem:[%s1 + $0x60] sm:$0x3f]
  %v28 = vperm.slane %v27, 0
  %v29 = vperm.slane %v27, 1
  %vm30 = vcmask 261120
  %v32 = vsel %vm30, 1.0, 0
  %34 = vmatpush.msra.mxu0 0.0
  %35 = vmatpush.msra.mxu0 0.0
  %36 = vmatpush.msra.mxu0 0.0
  %37 = vmatpush.msra.mxu0 0.0
  %38 = vmatpush.msra.mxu0 0.0
  %39 = vmatpush.msra.mxu0 0.0
  %40 = vmatpush.msra.mxu0 0.0
  %41 = vmatpush.msra.mxu0 0.0
  %42 = vmatpush.msra.mxu0 0.0
  %43 = vmatpush.msra.mxu0 0.0
  %44 = vmatpush.msra.mxu0 0.0
  %45 = vmatpush.msra.mxu0 0.0
  %46 = vmatpush.msra.mxu0 %v14
  %47 = vmatpush.msra.mxu0 %v13
  %48 = vmatpush.msra.mxu0 %v12
  %49 = vmatpush.msra.mxu0 %v11
  %50 = vmatmul.f32.gmra.mxu0 %v32
  %v51 = vpop.f32.mrf.mxu0
  %v52 = vadd.f32 0.0, %v51
  %53 = vdwg.mxu0
  %v54 = vmul.f32 %v11, %v11
  %v55 = vmul.f32 %v12, %v12
  %v56 = vmul.f32 %v13, %v13
  %v57 = vmul.f32 %v14, %v14
  %58 = vmatpush.msra.mxu0 0.0
  %59 = vmatpush.msra.mxu0 0.0
  %60 = vmatpush.msra.mxu0 0.0
  %61 = vmatpush.msra.mxu0 0.0
  %62 = vmatpush.msra.mxu0 0.0
  %63 = vmatpush.msra.mxu0 0.0
  %64 = vmatpush.msra.mxu0 0.0
  %65 = vmatpush.msra.mxu0 0.0
  %66 = vmatpush.msra.mxu0 0.0
  %67 = vmatpush.msra.mxu0 0.0
  %68 = vmatpush.msra.mxu0 0.0
  %69 = vmatpush.msra.mxu0 0.0
  %70 = vmatpush.msra.mxu0 %v57
  %71 = vmatpush.msra.mxu0 %v56
  %72 = vmatpush.msra.mxu0 %v55
  %73 = vmatpush.msra.mxu0 %v54
  %74 = vmatmul.f32.gmra.mxu0 %v32
  %v75 = vpop.f32.mrf.mxu0
  %v76 = vadd.f32 0.0, %v75
  %77 = vdwg.mxu0
  %v78 = vmul.f32 %v52, 0.03125
  %v79 = vmul.f32 %v76, 0.03125
  %v80 = vmul.f32 %v78, %v78
  %v81 = vsub.f32 %v79, %v80
  %v82 = vmax.f32 %v81, 0.0
  %v83 = vperm.slane %v78, 0
  %v84 = vsub.f32 %v11, %v83
  %v85 = vsub.f32 %v12, %v83
  %v86 = vsub.f32 %v13, %v83
  %v87 = vsub.f32 %v14, %v83
  %v88 = vadd.f32 %v82, 1e-05
  %v89 = vrsqrt.pop %v88
  %v90 = vmul.f32 %v89, %v88
  %v91 = vmul.f32 %v90, %v89
  %v92 = vmul.f32 0.5, %v91
  %v93 = vsub.f32 1.5, %v92
  %v94 = vmul.f32 %v89, %v93
  %vm95 = vweird.f32 %v88
  %vm96 = vweird.f32 %v89
  %vm97 = vmor %vm95, %vm96
  %v98 = vsel %vm97, %v89, %v94
  %v100 = vrot.slane %v27, 2
  %v102 = vmul.f32 %v98, %v100
  %v103 = vperm.slane %v102, 0
  %v104 = vmul.f32 %v84, %v103
  %v105 = vmul.f32 %v85, %v103
  %v106 = vmul.f32 %v86, %v103
  %v107 = vmul.f32 %v87, %v103
  %v108 = vperm.slane %v27, 3
  %v109 = vadd.f32 %v104, %v108
  %v110 = vadd.f32 %v105, %v108
  %v111 = vadd.f32 %v106, %v108
  %v112 = vadd.f32 %v107, %v108
  %v114 = vsel %vm30, %v109, 0
  %v117 = vsel %vm30, %v110, 0
  %v120 = vsel %vm30, %v111, 0
  %v123 = vsel %vm30, %v112, 0
  %125 = vmatpush.msra.mxu0 0.0
  %126 = vmatpush.msra.mxu0 0.0
  %127 = vmatpush.msra.mxu0 0.0
  %128 = vmatpush.msra.mxu0 0.0
  %129 = vmatpush.msra.mxu0 0.0
  %130 = vmatpush.msra.mxu0 0.0
  %131 = vmatpush.msra.mxu0 0.0
  %132 = vmatpush.msra.mxu0 0.0
  %133 = vmatpush.msra.mxu0 0.0
  %134 = vmatpush.msra.mxu0 0.0
  %135 = vmatpush.msra.mxu0 0.0
  %136 = vmatpush.msra.mxu0 0.0
  %137 = vmatpush.msra.mxu0 %v18
  %138 = vmatpush.msra.mxu0 %v17
  %139 = vmatpush.msra.mxu0 %v16
  %140 = vmatpush.msra.mxu0 %v15
  %141 = vmatmul.f32.gmra.mxu0 %v114
  %v142 = vpop.f32.mrf.mxu0
  %v143 = vadd.f32 %v28, %v142
  %144 = vmatmul.f32.gmra.mxu0 %v117
  %v145 = vpop.f32.mrf.mxu0
  %v146 = vadd.f32 %v28, %v145
  %147 = vmatmul.f32.gmra.mxu0 %v120
  %v148 = vpop.f32.mrf.mxu0
  %v149 = vadd.f32 %v28, %v148
  %150 = vmatmul.f32.gmra.mxu0 %v123
  %v151 = vpop.f32.mrf.mxu0
  %v152 = vadd.f32 %v28, %v151
  %153 = vdwg.mxu0
  %vm154 = vcmp.gt.f32.partialorder %v143, 0.0
  %vm155 = vcmp.gt.f32.partialorder %v146, 0.0
  %vm156 = vcmp.gt.f32.partialorder %v149, 0.0
  %vm157 = vcmp.gt.f32.partialorder %v152, 0.0
  %v158 = vmul.f32 %v143, 0.3
  %v159 = vmul.f32 %v146, 0.3
  %v160 = vmul.f32 %v149, 0.3
  %v161 = vmul.f32 %v152, 0.3
  %v162 = vsel %vm154, %v143, %v158
  %v163 = vsel %vm155, %v146, %v159
  %v164 = vsel %vm156, %v149, %v160
  %v165 = vsel %vm157, %v152, %v161
  %vm166 = vcmask 523264
  %v168 = vsel %vm166, %v162, 0
  %v171 = vsel %vm166, %v163, 0
  %v174 = vsel %vm166, %v164, 0
  %v177 = vsel %vm166, %v165, 0
  %179 = vmatpush.msra.mxu0 0.0
  %180 = vmatpush.msra.mxu0 0.0
  %181 = vmatpush.msra.mxu0 0.0
  %182 = vmatpush.msra.mxu0 0.0
  %183 = vmatpush.msra.mxu0 0.0
  %184 = vmatpush.msra.mxu0 0.0
  %185 = vmatpush.msra.mxu0 0.0
  %186 = vmatpush.msra.mxu0 0.0
  %187 = vmatpush.msra.mxu0 %v26
  %188 = vmatpush.msra.mxu0 %v25
  %189 = vmatpush.msra.mxu0 %v24
  %190 = vmatpush.msra.mxu0 %v23
  %191 = vmatpush.msra.mxu0 %v22
  %192 = vmatpush.msra.mxu0 %v21
  %193 = vmatpush.msra.mxu0 %v20
  %194 = vmatpush.msra.mxu0 %v19
  %195 = vmatmul.f32.gmra.mxu0 %v168
  %v196 = vpop.f32.mrf.mxu0
  %v197 = vadd.f32 %v29, %v196
  %198 = vmatmul.f32.gmra.mxu0 %v171
  %v199 = vpop.f32.mrf.mxu0
  %v200 = vadd.f32 %v29, %v199
  %201 = vmatmul.f32.gmra.mxu0 %v174
  %v202 = vpop.f32.mrf.mxu0
  %v203 = vadd.f32 %v29, %v202
  %204 = vmatmul.f32.gmra.mxu0 %v177
  %v205 = vpop.f32.mrf.mxu0
  %v206 = vadd.f32 %v29, %v205
  %207 = vdwg.mxu0
  %vm208 = vcmp.gt.f32.partialorder %v197, 0.0
  %vm209 = vcmp.gt.f32.partialorder %v200, 0.0
  %vm210 = vcmp.gt.f32.partialorder %v203, 0.0
  %vm211 = vcmp.gt.f32.partialorder %v206, 0.0
  %v212 = vmul.f32 %v197, 0.3
  %v213 = vmul.f32 %v200, 0.3
  %v214 = vmul.f32 %v203, 0.3
  %v215 = vmul.f32 %v206, 0.3
  %v216 = vsel %vm208, %v197, %v212
  %v217 = vsel %vm209, %v200, %v213
  %v218 = vsel %vm210, %v203, %v214
  %v219 = vsel %vm211, %v206, %v215
  %v220 = vadd.f32 %v11, %v216
  %v221 = vadd.f32 %v12, %v217
  %v222 = vadd.f32 %v13, %v218
  %v223 = vadd.f32 %v14, %v219
  %224 = vmatpush.msra.mxu0 0.0
  %225 = vmatpush.msra.mxu0 0.0
  %226 = vmatpush.msra.mxu0 0.0
  %227 = vmatpush.msra.mxu0 0.0
  %228 = vmatpush.msra.mxu0 0.0
  %229 = vmatpush.msra.mxu0 0.0
  %230 = vmatpush.msra.mxu0 0.0
  %231 = vmatpush.msra.mxu0 0.0
  %232 = vmatpush.msra.mxu0 0.0
  %233 = vmatpush.msra.mxu0 0.0
  %234 = vmatpush.msra.mxu0 0.0
  %235 = vmatpush.msra.mxu0 0.0
  %236 = vmatpush.msra.mxu0 %v223
  %237 = vmatpush.msra.mxu0 %v222
  %238 = vmatpush.msra.mxu0 %v221
  %239 = vmatpush.msra.mxu0 %v220
  %240 = vmatmul.f32.gmra.mxu0 %v32
  %v241 = vpop.f32.mrf.mxu0
  %v242 = vadd.f32 0.0, %v241
  %243 = vdwg.mxu0
  %v244 = vmul.f32 %v220, %v220
  %v245 = vmul.f32 %v221, %v221
  %v246 = vmul.f32 %v222, %v222
  %v247 = vmul.f32 %v223, %v223
  %248 = vmatpush.msra.mxu0 0.0
  %249 = vmatpush.msra.mxu0 0.0
  %250 = vmatpush.msra.mxu0 0.0
  %251 = vmatpush.msra.mxu0 0.0
  %252 = vmatpush.msra.mxu0 0.0
  %253 = vmatpush.msra.mxu0 0.0
  %254 = vmatpush.msra.mxu0 0.0
  %255 = vmatpush.msra.mxu0 0.0
  %256 = vmatpush.msra.mxu0 0.0
  %257 = vmatpush.msra.mxu0 0.0
  %258 = vmatpush.msra.mxu0 0.0
  %259 = vmatpush.msra.mxu0 0.0
  %260 = vmatpush.msra.mxu0 %v247
  %261 = vmatpush.msra.mxu0 %v246
  %262 = vmatpush.msra.mxu0 %v245
  %263 = vmatpush.msra.mxu0 %v244
  %264 = vmatmul.f32.gmra.mxu0 %v32
  %v265 = vpop.f32.mrf.mxu0
  %v266 = vadd.f32 0.0, %v265
  %267 = vdwg.mxu0
  %v268 = vmul.f32 %v242, 0.03125
  %v269 = vmul.f32 %v266, 0.03125
  %v270 = vmul.f32 %v268, %v268
  %v271 = vsub.f32 %v269, %v270
  %v272 = vmax.f32 %v271, 0.0
  %v273 = vperm.slane %v268, 0
  %v274 = vsub.f32 %v220, %v273
  %v275 = vsub.f32 %v221, %v273
  %v276 = vsub.f32 %v222, %v273
  %v277 = vsub.f32 %v223, %v273
  %v278 = vadd.f32 %v272, 1e-05
  %v279 = vrsqrt.pop %v278
  %v280 = vmul.f32 %v279, %v278
  %v281 = vmul.f32 %v280, %v279
  %v282 = vmul.f32 0.5, %v281
  %v283 = vsub.f32 1.5, %v282
  %v284 = vmul.f32 %v279, %v283
  %vm285 = vweird.f32 %v278
  %vm286 = vweird.f32 %v279
  %vm287 = vmor %vm285, %vm286
  %v288 = vsel %vm287, %v279, %v284
  %v289 = vrot.slane %v27, 4
  %v291 = vmul.f32 %v288, %v289
  %v292 = vperm.slane %v291, 0
  %v293 = vmul.f32 %v274, %v292
  %v294 = vmul.f32 %v275, %v292
  %v295 = vmul.f32 %v276, %v292
  %v296 = vmul.f32 %v277, %v292
  %v297 = vperm.slane %v27, 5
  %v298 = vadd.f32 %v293, %v297
  %v299 = vadd.f32 %v294, %v297
  %v300 = vadd.f32 %v295, %v297
  %v301 = vadd.f32 %v296, %v297
  %v303 = vsel %vm30, %v298, 0
  %v306 = vsel %vm30, %v299, 0
  %v309 = vsel %vm30, %v300, 0
  %v312 = vsel %vm30, %v301, 0
  %314 = vmatpush.msra.mxu0 0.0
  %315 = vmatpush.msra.mxu0 0.0
  %316 = vmatpush.msra.mxu0 0.0
  %317 = vmatpush.msra.mxu0 0.0
  %318 = vmatpush.msra.mxu0 0.0
  %319 = vmatpush.msra.mxu0 0.0
  %320 = vmatpush.msra.mxu0 0.0
  %321 = vmatpush.msra.mxu0 0.0
  %322 = vmatpush.msra.mxu0 0.0
  %323 = vmatpush.msra.mxu0 0.0
  %324 = vmatpush.msra.mxu0 0.0
  %325 = vmatpush.msra.mxu0 0.0
  %326 = vmatpush.msra.mxu0 %v18
  %327 = vmatpush.msra.mxu0 %v17
  %328 = vmatpush.msra.mxu0 %v16
  %329 = vmatpush.msra.mxu0 %v15
  %330 = vmatmul.f32.gmra.mxu0 %v303
  %v331 = vpop.f32.mrf.mxu0
  %v332 = vadd.f32 %v28, %v331
  %333 = vmatmul.f32.gmra.mxu0 %v306
  %v334 = vpop.f32.mrf.mxu0
  %v335 = vadd.f32 %v28, %v334
  %336 = vmatmul.f32.gmra.mxu0 %v309
  %v337 = vpop.f32.mrf.mxu0
  %v338 = vadd.f32 %v28, %v337
  %339 = vmatmul.f32.gmra.mxu0 %v312
  %v340 = vpop.f32.mrf.mxu0
  %v341 = vadd.f32 %v28, %v340
  %342 = vdwg.mxu0
  %vm343 = vcmp.gt.f32.partialorder %v332, 0.0
  %vm344 = vcmp.gt.f32.partialorder %v335, 0.0
  %vm345 = vcmp.gt.f32.partialorder %v338, 0.0
  %vm346 = vcmp.gt.f32.partialorder %v341, 0.0
  %v347 = vmul.f32 %v332, 0.3
  %v348 = vmul.f32 %v335, 0.3
  %v349 = vmul.f32 %v338, 0.3
  %v350 = vmul.f32 %v341, 0.3
  %v351 = vsel %vm343, %v332, %v347
  %v352 = vsel %vm344, %v335, %v348
  %v353 = vsel %vm345, %v338, %v349
  %v354 = vsel %vm346, %v341, %v350
  %v356 = vsel %vm166, %v351, 0
  %v359 = vsel %vm166, %v352, 0
  %v362 = vsel %vm166, %v353, 0
  %v365 = vsel %vm166, %v354, 0
  %367 = vmatpush.msra.mxu0 0.0
  %368 = vmatpush.msra.mxu0 0.0
  %369 = vmatpush.msra.mxu0 0.0
  %370 = vmatpush.msra.mxu0 0.0
  %371 = vmatpush.msra.mxu0 0.0
  %372 = vmatpush.msra.mxu0 0.0
  %373 = vmatpush.msra.mxu0 0.0
  %374 = vmatpush.msra.mxu0 0.0
  %375 = vmatpush.msra.mxu0 %v26
  %376 = vmatpush.msra.mxu0 %v25
  %377 = vmatpush.msra.mxu0 %v24
  %378 = vmatpush.msra.mxu0 %v23
  %379 = vmatpush.msra.mxu0 %v22
  %380 = vmatpush.msra.mxu0 %v21
  %381 = vmatpush.msra.mxu0 %v20
  %382 = vmatpush.msra.mxu0 %v19
  %383 = vmatmul.f32.gmra.mxu0 %v356
  %v384 = vpop.f32.mrf.mxu0
  %v385 = vadd.f32 %v29, %v384
  %386 = vmatmul.f32.gmra.mxu0 %v359
  %v387 = vpop.f32.mrf.mxu0
  %v388 = vadd.f32 %v29, %v387
  %389 = vmatmul.f32.gmra.mxu0 %v362
  %v390 = vpop.f32.mrf.mxu0
  %v391 = vadd.f32 %v29, %v390
  %392 = vmatmul.f32.gmra.mxu0 %v365
  %v393 = vpop.f32.mrf.mxu0
  %v394 = vadd.f32 %v29, %v393
  %395 = vdwg.mxu0
  %vm396 = vcmp.gt.f32.partialorder %v385, 0.0
  %vm397 = vcmp.gt.f32.partialorder %v388, 0.0
  %vm398 = vcmp.gt.f32.partialorder %v391, 0.0
  %vm399 = vcmp.gt.f32.partialorder %v394, 0.0
  %v400 = vmul.f32 %v385, 0.3
  %v401 = vmul.f32 %v388, 0.3
  %v402 = vmul.f32 %v391, 0.3
  %v403 = vmul.f32 %v394, 0.3
  %v404 = vsel %vm396, %v385, %v400
  %v405 = vsel %vm397, %v388, %v401
  %v406 = vsel %vm398, %v391, %v402
  %v407 = vsel %vm399, %v394, %v403
  %v408 = vadd.f32 %v220, %v404
  %v409 = vadd.f32 %v221, %v405
  %v410 = vadd.f32 %v222, %v406
  %v411 = vadd.f32 %v223, %v407
  %412 = vst.msk [vmem:[%s2] sm:$0xff] %vm30, %v408
  %414 = vrot.lane.b32.xlu0 %v409, 32
  %v415 = vpop.permute.xlu0 %414
  %vm417 = vcmask 523520
  %418 = vst.msk [vmem:[%s2] sm:$0xff] %vm417, %v415
  %420 = vrot.lane.b32.xlu0 %v410, 64
  %v421 = vpop.permute.xlu0 %420
  %vm423 = vcmask 785920
  %424 = vst.msk [vmem:[%s2] sm:$0xff] %vm423, %v421
  %426 = vrot.lane.b32.xlu0 %v411, 96
  %v427 = vpop.permute.xlu0 %426
  %vm429 = vcmask 1048320
  %430 = vst.msk [vmem:[%s2] sm:$0xff] %vm429, %v427
  // Predicated region
  $region10: #{mixer_block.1} parent=0 // pred_check
    _
  $region11: #{mixer_block.1} parent=0 // pred_check_branch
    %432 = sbr.rel (0) target = $region13
  $region12: #{mixer_block.1} parent=0 // pred_region
    _
  $region13: #{mixer_block.1} parent=0 // pred_fallthru
    _
  // Predicated region
  $region14: #{mixer_block.1} parent=0 // pred_check
    _
  $region15: #{mixer_block.1} parent=0 // pred_check_branch
    %434 = sbr.rel (0) target = $region17
  $region16: #{mixer_block.1} parent=0 // pred_region
    _
  $region17: #{mixer_block.1} parent=0 // pred_fallthru
    _

</llo_original>
